<compile_context>
chip_gen: v7x
topology: tpu7x:2x2x1
jax: 0.10.0
libtpu: 0.0.40
codegen_flags: <defaults>
</compile_context>

<pallas_src>
import functools

import jax
import jax.numpy as jnp
from jax.experimental import pallas as pl
from jax.experimental.pallas import tpu as pltpu

LANE = 128


def _round_up(x, m):
    return (x + m - 1) // m * m


# ----------------------------- Pallas kernel ------------------------------- #
def gcn_fused_kernel(a_ref, x0_ref, w_ref, b_ref, o_ref, acc_ref, h_ref):
    """Fused GCN stack.

    grid = (L, NI, NK)
      a_ref  : (tm, tk)   bf16   A_hat tile (i, k)
      x0_ref : (Np, FP)   bf16   padded input features (resident, constant index)
      w_ref  : (1, FP, FP) bf16  padded W^T of layer l
      b_ref  : (1, 1, FP) f32    padded bias of layer l
      o_ref  : (tm, FP)   f32    output row tile i
      acc_ref: (tm, FP)   f32    aggregation accumulator (scratch)
      h_ref  : (2, Np, FP) bf16  layer-resident features, ping-pong (scratch)
    """
    l = pl.program_id(0)
    i = pl.program_id(1)
    k = pl.program_id(2)
    nk = pl.num_programs(2)

    tm = acc_ref.shape[0]
    tk = a_ref.shape[1]
    parity = l % 2  # layer l reads slot (l % 2), writes slot ((l + 1) % 2)

    # Seed the resident h buffer with the padded input features, exactly once.
    @pl.when((l == 0) & (i == 0) & (k == 0))
    def _():
        h_ref[0, :, :] = x0_ref[...]

    @pl.when(k == 0)
    def _():
        acc_ref[...] = jnp.zeros_like(acc_ref)

    # Aggregation: acc += A_hat[i, k] @ h_in[k]   (bf16 operands, f32 accumulate)
    row_k = pl.multiple_of(k * tk, tk)
    h_k0 = h_ref[0, pl.ds(row_k, tk), :]
    h_k1 = h_ref[1, pl.ds(row_k, tk), :]
    h_k = jnp.where(parity == 0, h_k0, h_k1)
    acc_ref[...] += jnp.dot(a_ref[...], h_k, preferred_element_type=jnp.float32)

    # Epilogue (once per (l, i) tile): project with W^T, add bias, write out,
    # and update the ping-pong h buffer for the next layer.
    @pl.when(k == nk - 1)
    def _():
        z = (
            jnp.dot(
                acc_ref[...].astype(jnp.bfloat16),
                w_ref[0],
                preferred_element_type=jnp.float32,
            )
            + b_ref[0]
        )
        o_ref[...] = z  # final layer's write lands last -> correct output
        z_bf = z.astype(jnp.bfloat16)
        row_i = pl.multiple_of(i * tm, tm)

        @pl.when(parity == 0)
        def _():
            h_ref[1, pl.ds(row_i, tm), :] = z_bf

        @pl.when(parity == 1)
        def _():
            h_ref[0, pl.ds(row_i, tm), :] = z_bf


def gcn_fused_pallas(a_hat, features, wts, bs, f_out):
    """Run the whole GCN layer stack in a single pallas_call.

    a_hat   : [N, N]  f32 normalized adjacency
    features: [N, F_in] f32
    wts     : [L, FP, FP] bf16 padded, pre-transposed weights (W^T)
    bs      : [L, 1, FP]  f32  padded biases
    f_out   : true output feature count (static)
    """
    n, f_in = features.shape
    num_layers, fp, _ = wts.shape

    n_pad = _round_up(n, LANE)
    # Pick the largest of {512, 256, 128} that divides n_pad (v7x-safe tiles).
    for cand in (512, 256, 128):
        if n_pad % cand == 0:
            tm = tk = cand
            break
    ni = n_pad // tm
    nk = n_pad // tk

    # Wrapper-side padding / bf16 cast (A_hat entries are <=1 -> bf16 is benign).
    a_p = jnp.pad(a_hat.astype(jnp.bfloat16), ((0, n_pad - n), (0, n_pad - n)))
    x_p = jnp.pad(features.astype(jnp.bfloat16), ((0, n_pad - n), (0, fp - f_in)))

    out = pl.pallas_call(
        gcn_fused_kernel,
        out_shape=jax.ShapeDtypeStruct((n_pad, fp), jnp.float32),
        grid_spec=pltpu.PrefetchScalarGridSpec(
            num_scalar_prefetch=0,
            grid=(num_layers, ni, nk),
            in_specs=[
                pl.BlockSpec((tm, tk), lambda l, i, k: (i, k)),        # A_hat tile
                pl.BlockSpec((n_pad, fp), lambda l, i, k: (0, 0)),     # x0 (resident)
                pl.BlockSpec((1, fp, fp), lambda l, i, k: (l, 0, 0)),  # W^T of layer l
                pl.BlockSpec((1, 1, fp), lambda l, i, k: (l, 0, 0)),   # bias of layer l
            ],
            out_specs=pl.BlockSpec((tm, fp), lambda l, i, k: (i, 0)),
            scratch_shapes=[
                pltpu.VMEM((tm, fp), jnp.float32),          # aggregation accumulator
                pltpu.VMEM((2, n_pad, fp), jnp.bfloat16),   # h ping-pong across layers
            ],
        ),
        compiler_params=pltpu.CompilerParams(
            # Layer axis is sequential; row/reduction axes stay "arbitrary" because
            # the cross-layer VMEM-resident h forces single-core execution.
            # TODO(synk): megacore (v7x) split of the row axis would need h in
            # VMEM_SHARED or per-layer HBM round trips.
            dimension_semantics=("arbitrary", "arbitrary", "arbitrary"),
            vmem_limit_bytes=48 * 1024 * 1024,  # fits v7x's 64 MiB physical VMEM
        ),
    )(a_p, x_p, wts, bs)

    return out[:n, :f_out]


# ------------------------------ glue (JAX) --------------------------------- #
def build_normalized_adjacency(edge_index, num_nodes):
    """Dense D^-1/2 (A + I) D^-1/2 exactly as PyG's gcn_norm (add_self_loops=True)."""
    src = edge_index[0]
    dst = edge_index[1]
    loop = jnp.arange(num_nodes, dtype=edge_index.dtype)
    src = jnp.concatenate([src, loop])
    dst = jnp.concatenate([dst, loop])
    a = jnp.zeros((num_nodes, num_nodes), jnp.float32).at[dst, src].add(1.0)
    deg = a.sum(axis=1)
    deg_inv_sqrt = jnp.where(deg > 0, jax.lax.rsqrt(deg), 0.0)
    return deg_inv_sqrt[:, None] * a * deg_inv_sqrt[None, :]


def init_gcn_params(key, in_feats, n_hidden, n_layers):
    """Glorot-uniform weights [out, in], zero bias — matches PyG GCNConv defaults."""
    dims = [(in_feats, n_hidden)] + [(n_hidden, n_hidden)] * (n_layers - 1)
    params = []
    for (fi, fo) in dims:
        key, sub = jax.random.split(key)
        limit = jnp.sqrt(6.0 / (fi + fo))
        w = jax.random.uniform(sub, (fo, fi), jnp.float32, -limit, limit)
        b = jnp.zeros((fo,), jnp.float32)
        params.append((w, b))
    return params


def prepare_params(params):
    """Hoisted (once, outside the per-forward path): pad + transpose + stack.

    Returns wts [L, FP, FP] bf16 (W^T, zero-padded) and bs [L, 1, FP] f32.
    """
    max_dim = max(max(w.shape) for w, _ in params)
    fp = _round_up(max_dim, LANE)
    num_layers = len(params)
    wts = jnp.zeros((num_layers, fp, fp), jnp.bfloat16)
    bs = jnp.zeros((num_layers, 1, fp), jnp.float32)
    for li, (w, b) in enumerate(params):
        fo, fi = w.shape
        wts = wts.at[li, :fi, :fo].set(w.T.astype(jnp.bfloat16))
        bs = bs.at[li, 0, :fo].set(b.astype(jnp.float32))
    return wts, bs


@functools.partial(jax.jit, static_argnames=("num_nodes", "f_out"))
def gcn_forward(features, edge_index, wts, bs, num_nodes, f_out):
    a_hat = build_normalized_adjacency(edge_index, num_nodes)
    # Dropout between layers is identity in inference mode.
    # TODO(synk): training-mode dropout (pltpu.prng_random_bits mask) not wired in.
    return gcn_fused_pallas(a_hat, features, wts, bs, f_out)


# reference in plain f32 JAX (for a sanity check)
def gcn_forward_ref(features, edge_index, params, num_nodes):
    a_hat = build_normalized_adjacency(edge_index, num_nodes)
    h = features
    for (w, b) in params:
        h = a_hat @ (h @ w.T) + b[None, :]
    return h


if __name__ == "__main__":
    N = 64          # nodes
    IN_FEATS = 16
    N_HIDDEN = 32
    N_LAYERS = 2    # -> 2 GCNConv layers: in->hidden, hidden->hidden

    key = jax.random.PRNGKey(0)
    k_feat, k_edge, k_par = jax.random.split(key, 3)

    features = jax.random.normal(k_feat, (N, IN_FEATS), jnp.float32)

    # deterministic synthetic graph: a ring plus some random edges
    ring_src = jnp.arange(N, dtype=jnp.int32)
    ring_dst = (ring_src + 1) % N
    rand_src = jax.random.randint(k_edge, (N,), 0, N, dtype=jnp.int32)
    rand_dst = jax.random.randint(jax.random.fold_in(k_edge, 1), (N,), 0, N, dtype=jnp.int32)
    edge_index = jnp.stack(
        [jnp.concatenate([ring_src, rand_src]), jnp.concatenate([ring_dst, rand_dst])]
    )  # [2, 2N]

    params = init_gcn_params(k_par, IN_FEATS, N_HIDDEN, N_LAYERS)
    wts, bs = prepare_params(params)            # hoisted out of the forward path
    F_OUT = params[-1][0].shape[0]

    out = gcn_forward(features, edge_index, wts, bs, N, F_OUT)
    out = jax.block_until_ready(out)

    ref = gcn_forward_ref(features, edge_index, params, N)
    assert out.shape == (N, N_HIDDEN)
    # bf16 MXU operands with f32 accumulation -> loosened tolerance vs pure-f32 ref
    assert jnp.allclose(out, ref, atol=5e-2, rtol=5e-2)

    print("KERNEL_OK")
</pallas_src>

<mosaic_0001>
module attributes {stable_mosaic.version = 11 : i64} {
  func.func private @main(%arg0: i32) attributes {dimension_semantics = [#tpu.dimension_semantics<core_parallel>], iteration_bounds = array<i64: 2>, tpu.core_type = #tpu.core_type<sc_scalar_subcore>, window_params = []} {
    return
  }
}

module attributes {stable_mosaic.version = 11 : i64} {
  func.func private @main(%arg0: i32) attributes {dimension_semantics = [#tpu.dimension_semantics<core_parallel>], iteration_bounds = array<i64: 2>, tpu.core_type = #tpu.core_type<sc_scalar_subcore>, window_params = []} {
    return
  }
}

module attributes {stable_mosaic.version = 11 : i64} {
  func.func @gcn_fused_kernel(%arg0: i32, %arg1: i32, %arg2: i32, %arg3: memref<128x128xbf16, #tpu.memory_space<vmem>>, %arg4: memref<128x128xbf16, #tpu.memory_space<vmem>>, %arg5: memref<1x128x128xbf16, #tpu.memory_space<vmem>>, %arg6: memref<1x1x128xf32, #tpu.memory_space<vmem>>, %arg7: memref<128x128xf32, #tpu.memory_space<vmem>>, %arg8: memref<128x128xf32, #tpu.memory_space<vmem>>, %arg9: memref<2x128x128xbf16, #tpu.memory_space<vmem>>) attributes {dimension_semantics = [#tpu.dimension_semantics<arbitrary>, #tpu.dimension_semantics<arbitrary>, #tpu.dimension_semantics<arbitrary>], iteration_bounds = array<i64: 2, 1, 1>, scalar_prefetch = 0 : i64, scratch_operands = 2 : i64, tpu.core_type = #tpu.core_type<tc>, window_params = [{transform_indices = @transform_0, window_bounds = array<i64: 128, 128>}, {pipeline_mode = #tpu.pipeline_mode<synchronous>, transform_indices = @transform_1, window_bounds = array<i64: 128, 128>}, {transform_indices = @transform_2, window_bounds = array<i64: 1, 128, 128>}, {transform_indices = @transform_3, window_bounds = array<i64: 1, 1, 128>}, {transform_indices = @transform_4, window_bounds = array<i64: 128, 128>}]} {
    %c2_i32 = arith.constant 2 : i32
    %c0_i32 = arith.constant 0 : i32
    %0 = arith.cmpi eq, %c2_i32, %c0_i32 : i32
    %c1_i32 = arith.constant 1 : i32
    %1 = arith.select %0, %c1_i32, %c2_i32 : i32
    %2 = arith.remsi %arg0, %1 : i32
    %c0_i32_0 = arith.constant 0 : i32
    %3 = arith.cmpi ne, %2, %c0_i32_0 : i32
    %c0_i32_1 = arith.constant 0 : i32
    %4 = arith.cmpi slt, %2, %c0_i32_1 : i32
    %c0_i32_2 = arith.constant 0 : i32
    %5 = arith.cmpi slt, %1, %c0_i32_2 : i32
    %6 = arith.xori %4, %5 : i1
    %7 = arith.andi %6, %3 : i1
    %8 = arith.addi %2, %1 : i32
    %9 = arith.select %7, %8, %2 : i32
    %c0_i32_3 = arith.constant 0 : i32
    %10 = arith.cmpi eq, %arg0, %c0_i32_3 : i32
    %c0_i32_4 = arith.constant 0 : i32
    %11 = arith.cmpi eq, %arg1, %c0_i32_4 : i32
    %12 = arith.andi %10, %11 : i1
    %c0_i32_5 = arith.constant 0 : i32
    %13 = arith.cmpi eq, %arg2, %c0_i32_5 : i32
    %14 = arith.andi %12, %13 : i1
    %15 = arith.extui %14 : i1 to i32
    %c0_i32_6 = arith.constant 0 : i32
    %16 = arith.cmpi ne, %15, %c0_i32_6 : i32
    scf.if %16 {
      %c0_20 = arith.constant 0 : index
      %c0_21 = arith.constant 0 : index
      %38 = vector.load %arg4[%c0_20, %c0_21] : memref<128x128xbf16, #tpu.memory_space<vmem>>, vector<128x128xbf16>
      %c0_22 = arith.constant 0 : index
      %c0_23 = arith.constant 0 : index
      %c0_24 = arith.constant 0 : index
      %39 = vector.load %arg9[%c0_22, %c0_23, %c0_24] : memref<2x128x128xbf16, #tpu.memory_space<vmem>>, vector<1x128x128xbf16>
      %40 = vector.shape_cast %39 : vector<1x128x128xbf16> to vector<128x128xbf16>
      %41 = vector.shape_cast %38 : vector<128x128xbf16> to vector<1x128x128xbf16>
      tpu.vector_store %arg9[%c0_22, %c0_23, %c0_24], %41 {strides = array<i32>} : memref<2x128x128xbf16, #tpu.memory_space<vmem>>, vector<1x128x128xbf16>,
    } else {
    }
    %c0_i32_7 = arith.constant 0 : i32
    %17 = arith.cmpi eq, %arg2, %c0_i32_7 : i32
    %18 = arith.extui %17 : i1 to i32
    %c0_i32_8 = arith.constant 0 : i32
    %19 = arith.cmpi ne, %18, %c0_i32_8 : i32
    scf.if %19 {
      %cst_20 = arith.constant 0.000000e+00 : f32
      %38 = vector.broadcast %cst_20 : f32 to vector<128x128xf32>
      %c0_21 = arith.constant 0 : index
      %c0_22 = arith.constant 0 : index
      %39 = vector.load %arg8[%c0_21, %c0_22] : memref<128x128xf32, #tpu.memory_space<vmem>>, vector<128x128xf32>
      tpu.vector_store %arg8[%c0_21, %c0_22], %38 {strides = array<i32>} : memref<128x128xf32, #tpu.memory_space<vmem>>, vector<128x128xf32>,
    } else {
    }
    %c128_i32 = arith.constant 128 : i32
    %20 = arith.muli %arg2, %c128_i32 : i32
    %21 = tpu.assume_multiple %20, 128 : i32
    %c0 = arith.constant 0 : index
    %22 = arith.index_cast %21 : i32 to index
    %c0_9 = arith.constant 0 : index
    %23 = vector.load %arg9[%c0, %22, %c0_9] : memref<2x128x128xbf16, #tpu.memory_space<vmem>>, vector<1x128x128xbf16>
    %24 = vector.shape_cast %23 : vector<1x128x128xbf16> to vector<128x128xbf16>
    %c1 = arith.constant 1 : index
    %25 = arith.index_cast %21 : i32 to index
    %c0_10 = arith.constant 0 : index
    %26 = vector.load %arg9[%c1, %25, %c0_10] : memref<2x128x128xbf16, #tpu.memory_space<vmem>>, vector<1x128x128xbf16>
    %27 = vector.shape_cast %26 : vector<1x128x128xbf16> to vector<128x128xbf16>
    %c0_i32_11 = arith.constant 0 : i32
    %28 = arith.cmpi eq, %9, %c0_i32_11 : i32
    %29 = arith.select %28, %24, %27 : vector<128x128xbf16>
    %c0_12 = arith.constant 0 : index
    %c0_13 = arith.constant 0 : index
    %30 = vector.load %arg8[%c0_12, %c0_13] : memref<128x128xf32, #tpu.memory_space<vmem>>, vector<128x128xf32>
    %c0_14 = arith.constant 0 : index
    %c0_15 = arith.constant 0 : index
    %31 = vector.load %arg3[%c0_14, %c0_15] : memref<128x128xbf16, #tpu.memory_space<vmem>>, vector<128x128xbf16>
    %cst = arith.constant dense<0.000000e+00> : vector<128x128xf32>
    %32 = tpu.matmul %31, %29, %cst {dimension_numbers = #tpu.dot_dimension_numbers<[1], [0], [0], [1], [0, 0, 1, 1], [], []>} : vector<128x128xbf16>, vector<128x128xbf16>, vector<128x128xf32> -> vector<128x128xf32>
    %33 = arith.addf %30, %32 : vector<128x128xf32>
    %c0_16 = arith.constant 0 : index
    %c0_17 = arith.constant 0 : index
    %34 = vector.load %arg8[%c0_16, %c0_17] : memref<128x128xf32, #tpu.memory_space<vmem>>, vector<128x128xf32>
    tpu.vector_store %arg8[%c0_16, %c0_17], %33 {strides = array<i32>} : memref<128x128xf32, #tpu.memory_space<vmem>>, vector<128x128xf32>,
    %c0_i32_18 = arith.constant 0 : i32
    %35 = arith.cmpi eq, %arg2, %c0_i32_18 : i32
    %36 = arith.extui %35 : i1 to i32
    %c0_i32_19 = arith.constant 0 : i32
    %37 = arith.cmpi ne, %36, %c0_i32_19 : i32
    scf.if %37 {
      %c0_20 = arith.constant 0 : index
      %c0_21 = arith.constant 0 : index
      %38 = vector.load %arg8[%c0_20, %c0_21] : memref<128x128xf32, #tpu.memory_space<vmem>>, vector<128x128xf32>
      %39 = arith.truncf %38 : vector<128x128xf32> to vector<128x128xbf16>
      %c0_22 = arith.constant 0 : index
      %c0_23 = arith.constant 0 : index
      %c0_24 = arith.constant 0 : index
      %40 = vector.load %arg5[%c0_22, %c0_23, %c0_24] : memref<1x128x128xbf16, #tpu.memory_space<vmem>>, vector<1x128x128xbf16>
      %41 = vector.shape_cast %40 : vector<1x128x128xbf16> to vector<128x128xbf16>
      %cst_25 = arith.constant dense<0.000000e+00> : vector<128x128xf32>
      %42 = tpu.matmul %39, %41, %cst_25 {dimension_numbers = #tpu.dot_dimension_numbers<[1], [0], [0], [1], [0, 0, 1, 1], [], []>} : vector<128x128xbf16>, vector<128x128xbf16>, vector<128x128xf32> -> vector<128x128xf32>
      %c0_26 = arith.constant 0 : index
      %c0_27 = arith.constant 0 : index
      %c0_28 = arith.constant 0 : index
      %43 = vector.load %arg6[%c0_26, %c0_27, %c0_28] : memref<1x1x128xf32, #tpu.memory_space<vmem>>, vector<1x1x128xf32>
      %44 = vector.shape_cast %43 : vector<1x1x128xf32> to vector<1x128xf32>
      %45 = vector.broadcast %44 : vector<1x128xf32> to vector<128x128xf32>
      %46 = arith.addf %42, %45 : vector<128x128xf32>
      %c0_29 = arith.constant 0 : index
      %c0_30 = arith.constant 0 : index
      %47 = vector.load %arg7[%c0_29, %c0_30] : memref<128x128xf32, #tpu.memory_space<vmem>>, vector<128x128xf32>
      tpu.vector_store %arg7[%c0_29, %c0_30], %46 {strides = array<i32>} : memref<128x128xf32, #tpu.memory_space<vmem>>, vector<128x128xf32>,
      %48 = arith.truncf %46 : vector<128x128xf32> to vector<128x128xbf16>
      %c128_i32_31 = arith.constant 128 : i32
      %49 = arith.muli %arg1, %c128_i32_31 : i32
      %50 = tpu.assume_multiple %49, 128 : i32
      %c0_i32_32 = arith.constant 0 : i32
      %51 = arith.cmpi eq, %9, %c0_i32_32 : i32
      %52 = arith.extui %51 : i1 to i32
      %c0_i32_33 = arith.constant 0 : i32
      %53 = arith.cmpi ne, %52, %c0_i32_33 : i32
      scf.if %53 {
        %c1_36 = arith.constant 1 : index
        %57 = arith.index_cast %50 : i32 to index
        %c0_37 = arith.constant 0 : index
        %58 = vector.load %arg9[%c1_36, %57, %c0_37] : memref<2x128x128xbf16, #tpu.memory_space<vmem>>, vector<1x128x128xbf16>
        %59 = vector.shape_cast %58 : vector<1x128x128xbf16> to vector<128x128xbf16>
        %60 = vector.shape_cast %48 : vector<128x128xbf16> to vector<1x128x128xbf16>
        tpu.vector_store %arg9[%c1_36, %57, %c0_37], %60 {strides = array<i32>} : memref<2x128x128xbf16, #tpu.memory_space<vmem>>, vector<1x128x128xbf16>,
      } else {
      }
      %c1_i32_34 = arith.constant 1 : i32
      %54 = arith.cmpi eq, %9, %c1_i32_34 : i32
      %55 = arith.extui %54 : i1 to i32
      %c0_i32_35 = arith.constant 0 : i32
      %56 = arith.cmpi ne, %55, %c0_i32_35 : i32
      scf.if %56 {
        %c0_36 = arith.constant 0 : index
        %57 = arith.index_cast %50 : i32 to index
        %c0_37 = arith.constant 0 : index
        %58 = vector.load %arg9[%c0_36, %57, %c0_37] : memref<2x128x128xbf16, #tpu.memory_space<vmem>>, vector<1x128x128xbf16>
        %59 = vector.shape_cast %58 : vector<1x128x128xbf16> to vector<128x128xbf16>
        %60 = vector.shape_cast %48 : vector<128x128xbf16> to vector<1x128x128xbf16>
        tpu.vector_store %arg9[%c0_36, %57, %c0_37], %60 {strides = array<i32>} : memref<2x128x128xbf16, #tpu.memory_space<vmem>>, vector<1x128x128xbf16>,
      } else {
      }
    } else {
    }
    return
  }
  func.func @transform_0(%arg0: i32, %arg1: i32, %arg2: i32) -> (i32, i32) {
    %c0_i32 = arith.constant 0 : i32
    return %arg1, %arg2 : i32, i32
  }
  func.func @transform_1(%arg0: i32, %arg1: i32, %arg2: i32) -> (i32, i32) {
    %c0_i32 = arith.constant 0 : i32
    %c0_i32_0 = arith.constant 0 : i32
    %c0_i32_1 = arith.constant 0 : i32
    return %c0_i32, %c0_i32_0 : i32, i32
  }
  func.func @transform_2(%arg0: i32, %arg1: i32, %arg2: i32) -> (i32, i32, i32) {
    %c0_i32 = arith.constant 0 : i32
    %c0_i32_0 = arith.constant 0 : i32
    %c0_i32_1 = arith.constant 0 : i32
    return %arg0, %c0_i32, %c0_i32_0 : i32, i32, i32
  }
  func.func @transform_3(%arg0: i32, %arg1: i32, %arg2: i32) -> (i32, i32, i32) {
    %c0_i32 = arith.constant 0 : i32
    %c0_i32_0 = arith.constant 0 : i32
    %c0_i32_1 = arith.constant 0 : i32
    return %arg0, %c0_i32, %c0_i32_0 : i32, i32, i32
  }
  func.func @transform_4(%arg0: i32, %arg1: i32, %arg2: i32) -> (i32, i32) {
    %c0_i32 = arith.constant 0 : i32
    %c0_i32_0 = arith.constant 0 : i32
    return %arg1, %c0_i32 : i32, i32
  }
}

</mosaic_0001>

<llo_original>
// kernel: gcn_forward.1
$region0: #{gcn_forward.1}
  #allocation0 [shape = 'u32[]', space=smem, size = 0x4, offset = 0x4, fixed_abs, tag = 'smem constant byte address 0x4 - core index']
  #allocation1 [shape = 'u32[144,128]{1,0:T(1,128)}', space=vmem, size = 0x12000, scoped, tag = 'internal scratch']
  #allocation2 [shape = 'f32[128,128]{1,0:T(8,128)}', space=vmem, size = 0x10000, scoped, tag = 'scratch operand']
  #allocation3 [shape = 'bf16[2,128,128]{2,1,0:T(16,128)(2,1)}', space=vmem, size = 0x10000, scoped, tag = 'scratch operand']
  %s0 = inlined_call_operand.vmem [shape: bf16[128,128], index: 0, kind: input, shape index: {}]
  %s1 = inlined_call_operand.vmem [shape: bf16[128,128], index: 1, kind: input, shape index: {}]
  %s2 = inlined_call_operand.vmem [shape: bf16[2,128,128], index: 2, kind: input, shape index: {}]
  %s3 = inlined_call_operand.vmem [shape: f32[2,1,128], index: 3, kind: input, shape index: {}]
  %s4 = inlined_call_operand.vmem [shape: f32[128,128], index: 4, kind: output, shape index: {}]
  %s5 = sld [smem:[#allocation0]]
  $region69: #{gcn_forward.1} parent=0
    _
  %s7 = ssub.s32 1, %s5
  %s8 = scalar_select 0, %s7, %s5
  loop: start=0, step=1, limit=4
  $region2: #{gcn_forward.1} parent=0 // loop_pre_header
    _
  $region3: #{gcn_forward.1} parent=0 // loop_header
    %s10 = sphi 0, %s14
    %p11 = scmp.ge.s32.totalorder %s10, 4
    %s17 = sphi 0, %s36
    %s18 = sphi 0, %s32
    %s19 = sphi 0, %s28
    %s20 = sphi 0, %s17
    %s21 = sphi 0, %s18
    %s22 = sphi 0, %s19
    %s23 = sphi 0, %s20
    %s24 = sphi 0, %s21
    %s25 = sphi 0, %s22
    %s41 = sphi 0, %s43
    %s44 = sphi 0, %s41
    %s45 = sphi 0, %s44
    %s61 = sphi 0, %s45
    %s65 = sphi 0, %s65
    %s67 = sphi 0, %s65
    %s68 = sphi 0, %s67
    %s82 = sphi 0, %s68
    %s88 = sphi 0, %s90
    %s91 = sphi 0, %s88
    %s92 = sphi 0, %s91
    %s108 = sphi 0, %s92
    %s114 = sphi 0, %s116
    %s117 = sphi 0, %s114
    %s118 = sphi 0, %s117
    %s134 = sphi 0, %s118
    %s140 = sphi 0, %s142
    %s143 = sphi 0, %s140
    %s144 = sphi 0, %s143
    %s160 = sphi 0, %s144
  $region4: #{gcn_forward.1} parent=0 // loop_header_branch
    %13 = sbr.rel (%p11) target = $region8
  $region5: #{gcn_forward.1} parent=0 // loop_body
    %s15 = ssub.s32 %s10, 1
    %s16 = ssub.s32 %s10, 2
    %s26 = sadd.s32 1, %s19
    %p27 = scmp.ge.s32.totalorder %s26, 1
    %s28 = scalar_select %p27, 0, %s26
    %s29 = sadd.s32 1, %s18
    %s30 = scalar_select %p27, %s29, %s18
    %p31 = scmp.ge.s32.totalorder %s30, 1
    %s32 = scalar_select %p31, 0, %s30
    %s33 = sadd.s32 1, %s17
    %s34 = scalar_select %p31, %s33, %s17
    %p35 = scmp.ge.s32.totalorder %s34, 2
    %s36 = scalar_select %p35, 0, %s34
    %s37 = ssub.s32 %s18, %s32
    %s38 = ssub.s32 %s19, %s28
    %s39 = sor.u32 %s37, %s38
    %p40 = scmp.eq.s32.totalorder %s39, 0
    %s42 = sadd.s32 %s41, 1
    %s43 = scalar_select %p40, %s41, %s42
    %p46 = pneg %p40
    %p47 = scmp.eq.s32.totalorder %s10, 1
    %p48 = por %p46, %p47
    %p49 = scmp.ne.s32.totalorder %s41, %s44
    %p50 = scmp.eq.s32.totalorder %s10, 0
    %p51 = por %p49, %p50
    %p52 = scmp.ne.s32.totalorder %s41, %s44
    %p53 = scmp.eq.s32.totalorder %s15, 1
    %p54 = por %p52, %p53
    %p55 = scmp.ne.s32.totalorder %s44, %s45
    %p56 = scmp.eq.s32.totalorder %s15, 0
    %p57 = por %p55, %p56
    %p58 = scmp.ne.s32.totalorder %s44, %s45
    %p59 = scmp.eq.s32.totalorder %s16, 1
    %p60 = por %p58, %p59
    %p62 = scmp.ne.s32.totalorder %s45, %s61
    %p63 = scmp.eq.s32.totalorder %s16, 0
    %p64 = por %p62, %p63
    %s66 = sadd.s32 %s65, 1
    %p69 = scmp.eq.s32.totalorder %s10, 1
    %p70 = scmp.ne.s32.totalorder %s65, %s67
    %p71 = scmp.eq.s32.totalorder %s10, 0
    %p72 = por %p70, %p71
    %p73 = scmp.ne.s32.totalorder %s65, %s67
    %p74 = scmp.eq.s32.totalorder %s15, 1
    %p75 = por %p73, %p74
    %p76 = scmp.ne.s32.totalorder %s67, %s68
    %p77 = scmp.eq.s32.totalorder %s15, 0
    %p78 = por %p76, %p77
    %p79 = scmp.ne.s32.totalorder %s67, %s68
    %p80 = scmp.eq.s32.totalorder %s16, 1
    %p81 = por %p79, %p80
    %p83 = scmp.ne.s32.totalorder %s68, %s82
    %p84 = scmp.eq.s32.totalorder %s16, 0
    %p85 = por %p83, %p84
    %s86 = ssub.s32 %s17, %s36
    %p87 = scmp.eq.s32.totalorder %s86, 0
    %s89 = sadd.s32 %s88, 1
    %s90 = scalar_select %p87, %s88, %s89
    %p93 = pneg %p87
    %p94 = scmp.eq.s32.totalorder %s10, 1
    %p95 = por %p93, %p94
    %p96 = scmp.ne.s32.totalorder %s88, %s91
    %p97 = scmp.eq.s32.totalorder %s10, 0
    %p98 = por %p96, %p97
    %p99 = scmp.ne.s32.totalorder %s88, %s91
    %p100 = scmp.eq.s32.totalorder %s15, 1
    %p101 = por %p99, %p100
    %p102 = scmp.ne.s32.totalorder %s91, %s92
    %p103 = scmp.eq.s32.totalorder %s15, 0
    %p104 = por %p102, %p103
    %p105 = scmp.ne.s32.totalorder %s91, %s92
    %p106 = scmp.eq.s32.totalorder %s16, 1
    %p107 = por %p105, %p106
    %p109 = scmp.ne.s32.totalorder %s92, %s108
    %p110 = scmp.eq.s32.totalorder %s16, 0
    %p111 = por %p109, %p110
    %s112 = ssub.s32 %s17, %s36
    %p113 = scmp.eq.s32.totalorder %s112, 0
    %s115 = sadd.s32 %s114, 1
    %s116 = scalar_select %p113, %s114, %s115
    %p119 = pneg %p113
    %p120 = scmp.eq.s32.totalorder %s10, 1
    %p121 = por %p119, %p120
    %p122 = scmp.ne.s32.totalorder %s114, %s117
    %p123 = scmp.eq.s32.totalorder %s10, 0
    %p124 = por %p122, %p123
    %p125 = scmp.ne.s32.totalorder %s114, %s117
    %p126 = scmp.eq.s32.totalorder %s15, 1
    %p127 = por %p125, %p126
    %p128 = scmp.ne.s32.totalorder %s117, %s118
    %p129 = scmp.eq.s32.totalorder %s15, 0
    %p130 = por %p128, %p129
    %p131 = scmp.ne.s32.totalorder %s117, %s118
    %p132 = scmp.eq.s32.totalorder %s16, 1
    %p133 = por %p131, %p132
    %p135 = scmp.ne.s32.totalorder %s118, %s134
    %p136 = scmp.eq.s32.totalorder %s16, 0
    %p137 = por %p135, %p136
    %s138 = ssub.s32 %s18, %s32
    %p139 = scmp.eq.s32.totalorder %s138, 0
    %s141 = sadd.s32 %s140, 1
    %s142 = scalar_select %p139, %s140, %s141
    %p145 = pneg %p139
    %p146 = scmp.eq.s32.totalorder %s10, 1
    %p147 = por %p145, %p146
    %p148 = scmp.ne.s32.totalorder %s140, %s143
    %p149 = scmp.eq.s32.totalorder %s10, 0
    %p150 = por %p148, %p149
    %p151 = scmp.ne.s32.totalorder %s140, %s143
    %p152 = scmp.eq.s32.totalorder %s15, 1
    %p153 = por %p151, %p152
    %p154 = scmp.ne.s32.totalorder %s143, %s144
    %p155 = scmp.eq.s32.totalorder %s15, 0
    %p156 = por %p154, %p155
    %p157 = scmp.ne.s32.totalorder %s143, %s144
    %p158 = scmp.eq.s32.totalorder %s16, 1
    %p159 = por %p157, %p158
    %p161 = scmp.ne.s32.totalorder %s144, %s160
    %p162 = scmp.eq.s32.totalorder %s16, 0
    %p163 = por %p161, %p162
    %p164 = scmp.le.s32.totalorder 1, %s10
    %p165 = scmp.lt.s32.totalorder %s10, 3
    %p166 = pnand %p164, %p165
    %p167 = pneg %p166
    // Predicated region
    $region9: #{gcn_forward.1} parent=5 // pred_check
      _
    $region10: #{gcn_forward.1} parent=5 // pred_check_branch
      %169 = sbr.rel (%p166) target = $region12
    $region11: #{gcn_forward.1} parent=5 // pred_region
      %s170 = ssub.s32 %s10, 1
      // Predicated region
      $region13: #{gcn_forward.1} parent=11 // pred_check
        %p171 = pneg %p57
      $region14: #{gcn_forward.1} parent=11 // pred_check_branch
        %173 = sbr.rel (%p171) target = $region16
      $region15: #{gcn_forward.1} parent=11 // pred_region
        %s174 = smul.u32 16, %s21
        %p175 = scmp.lt.s32.totalorder %s174, 15
        %s176 = scalar_select %p175, %s174, 15
        %p177 = scmp.lt.s32.totalorder %s22, 0
        %s178 = scalar_select %p177, %s22, 0
        %s179 = sadd.s32 %s178, %s176
        %s180 = smul.addr %s179, 4
        %s181 = scalar_lea.vmem %s0, %s180
        %s182 = smul.u32 16, %s21
      $region16: #{gcn_forward.1} parent=11 // pred_fallthru
        _
      // Predicated region
      $region17: #{gcn_forward.1} parent=11 // pred_check
        %p183 = pneg %p78
      $region18: #{gcn_forward.1} parent=11 // pred_check_branch
        %185 = sbr.rel (%p183) target = $region20
      $region19: #{gcn_forward.1} parent=11 // pred_region
        _
      $region20: #{gcn_forward.1} parent=11 // pred_fallthru
        _
    $region12: #{gcn_forward.1} parent=5 // pred_fallthru
      _
    %p186 = scmp.lt.s32.totalorder %s10, 2
    // Predicated region
    $region21: #{gcn_forward.1} parent=5 // pred_check
      %p187 = pneg %p186
    $region22: #{gcn_forward.1} parent=5 // pred_check_branch
      %189 = sbr.rel (%p187) target = $region24
    $region23: #{gcn_forward.1} parent=5 // pred_region
      // Predicated region
      $region25: #{gcn_forward.1} parent=23 // pred_check
        %p190 = pneg %p98
      $region26: #{gcn_forward.1} parent=23 // pred_check_branch
        %192 = sbr.rel (%p190) target = $region28
      $region27: #{gcn_forward.1} parent=23 // pred_region
        %p193 = scmp.lt.s32.totalorder %s17, 1
        %s194 = scalar_select %p193, %s17, 1
        %s195 = smul.addr %s194, 16
        %s196 = smul.addr %s195, 4
        %s197 = scalar_lea.vmem %s2, %s196
      $region28: #{gcn_forward.1} parent=23 // pred_fallthru
        _
      // Predicated region
      $region29: #{gcn_forward.1} parent=23 // pred_check
        %p198 = pneg %p124
      $region30: #{gcn_forward.1} parent=23 // pred_check_branch
        %200 = sbr.rel (%p198) target = $region32
      $region31: #{gcn_forward.1} parent=23 // pred_region
        %p201 = scmp.lt.s32.totalorder %s17, 1
        %s202 = scalar_select %p201, %s17, 1
        %s203 = scalar_lea.vmem %s3, %s202
      $region32: #{gcn_forward.1} parent=23 // pred_fallthru
        _
    $region24: #{gcn_forward.1} parent=5 // pred_fallthru
      _
    %p204 = scmp.le.s32.totalorder 1, %s10
    %p205 = scmp.lt.s32.totalorder %s10, 3
    %p206 = pnand %p204, %p205
    %p207 = pneg %p206
    // Predicated region
    $region33: #{gcn_forward.1} parent=5 // pred_check
      _
    $region34: #{gcn_forward.1} parent=5 // pred_check_branch
      %209 = sbr.rel (%p206) target = $region36
    $region35: #{gcn_forward.1} parent=5 // pred_region
      %s210 = ssub.s32 %s10, 1
      %s211 = smul.u32 16, %s21
      %p212 = scmp.lt.s32.totalorder %s211, 15
      %s213 = scalar_select %p212, %s211, 15
      %p214 = scmp.lt.s32.totalorder %s22, 0
      %s215 = scalar_select %p214, %s22, 0
      %s216 = sadd.s32 %s215, %s213
      %s217 = smul.addr %s216, 4
      %s218 = scalar_lea.vmem %s0, %s217
      %p219 = pneg %p57
      %p220 = pneg %p54
      %p221 = pneg %p78
      %p222 = pneg %p75
      %p223 = scmp.lt.s32.totalorder %s20, 1
      %s224 = scalar_select %p223, %s20, 1
      %s225 = smul.addr %s224, 16
      %s226 = smul.addr %s225, 4
      %s227 = scalar_lea.vmem %s2, %s226
      %p228 = pneg %p104
      %p229 = pneg %p101
      %p230 = scmp.lt.s32.totalorder %s20, 1
      %s231 = scalar_select %p230, %s20, 1
      %s232 = scalar_lea.vmem %s3, %s231
      %p233 = pneg %p130
      %p234 = pneg %p127
      %p235 = pneg %p156
      %p236 = pneg %p153
      %s237 = smul.u32 16, %s21
      %p238 = scmp.lt.s32.totalorder %s237, 15
      %s239 = scalar_select %p238, %s237, 15
      %s240 = smul.addr %s239, 8
      %s241 = scalar_lea.vmem %s4, %s240
      %s242 = smul.u32 16, %s21
      %p243 = scmp.lt.s32.totalorder %s242, 15
      %s244 = scalar_select %p243, %s242, 15
      %p245 = scmp.lt.s32.totalorder %s22, 0
      %s246 = scalar_select %p245, %s22, 0
      %s247 = sadd.s32 %s246, %s244
      %s248 = smul.addr %s247, 4
      %s249 = scalar_lea.vmem %s0, %s248
      %s250 = smul.u32 16, %s21
      %p251 = scmp.lt.s32.totalorder %s20, 1
      %s252 = scalar_select %p251, %s20, 1
      %s253 = smul.addr %s252, 16
      %s254 = smul.addr %s253, 4
      %s255 = scalar_lea.vmem %s2, %s254
      %p256 = scmp.lt.s32.totalorder %s20, 1
      %s257 = scalar_select %p256, %s20, 1
      %s258 = scalar_lea.vmem %s3, %s257
      %s259 = smul.u32 16, %s21
      %p260 = scmp.lt.s32.totalorder %s259, 15
      %s261 = scalar_select %p260, %s259, 15
      %s262 = smul.addr %s261, 8
      %s263 = scalar_lea.vmem %s4, %s262
      %s264 = smul.u32 16, %s21
      %p266 = scmp.lt.s32.totalorder %s20, 0
      %s267 = ssub.s32 0, %s20
      %s268 = scalar_select %p266, %s267, %s20
      %s269 = sand.u32 %s268, 1
      %s270 = ssub.s32 0, %s269
      %s271 = scalar_select %p266, %s270, %s269
      %p272 = scmp.ne.s32.totalorder %s271, 0
      %p273 = scmp.lt.s32.totalorder %s271, 0
      %p274 = pnand %p273, %p272
      %p275 = pneg %p274
      %s276 = sadd.s32 %s271, 2
      %s277 = scalar_select %p275, %s276, %s271
      %p278 = scmp.eq.s32.totalorder %s20, 0
      %p279 = scmp.eq.s32.totalorder %s21, 0
      %p280 = pnand %p278, %p279
      %p281 = pneg %p280
      %p282 = scmp.eq.s32.totalorder %s22, 0
      %p283 = pnand %p281, %p282
      %p284 = pneg %p283
      // Predicated region
      $region37: #{gcn_forward.1} parent=35 // pred_check
        _
      $region38: #{gcn_forward.1} parent=35 // pred_check_branch
        %286 = sbr.rel (%p283) target = $region40
      $region39: #{gcn_forward.1} parent=35 // pred_region
        %v287 = vld [vmem:[%s1] sm:$0xf]
        %v288 = vld [vmem:[%s1 + $0x4] sm:$0xf]
        %v289 = vld [vmem:[%s1 + $0x8] sm:$0xf]
        %v290 = vld [vmem:[%s1 + $0xc] sm:$0xf]
        %v291 = vld [vmem:[%s1 + $0x10] sm:$0xf]
        %v292 = vld [vmem:[%s1 + $0x14] sm:$0xf]
        %v293 = vld [vmem:[%s1 + $0x18] sm:$0xf]
        %v294 = vld [vmem:[%s1 + $0x1c] sm:$0xf]
        %v295 = vld [vmem:[%s1 + $0x20] sm:$0xf]
        %v296 = vld [vmem:[%s1 + $0x24] sm:$0xf]
        %v297 = vld [vmem:[%s1 + $0x28] sm:$0xf]
        %v298 = vld [vmem:[%s1 + $0x2c] sm:$0xf]
        %v299 = vld [vmem:[%s1 + $0x30] sm:$0xf]
        %v300 = vld [vmem:[%s1 + $0x34] sm:$0xf]
        %v301 = vld [vmem:[%s1 + $0x38] sm:$0xf]
        %v302 = vld [vmem:[%s1 + $0x3c] sm:$0xf]
        %v319 = vunpack.c.l.b16 %v287
        %v320 = vunpack.c.l.b16 %v288
        %v321 = vunpack.c.l.b16 %v289
        %v322 = vunpack.c.l.b16 %v290
        %v323 = vunpack.c.l.b16 %v291
        %v324 = vunpack.c.l.b16 %v292
        %v325 = vunpack.c.l.b16 %v293
        %v326 = vunpack.c.l.b16 %v294
        %v327 = vunpack.c.l.b16 %v295
        %v328 = vunpack.c.l.b16 %v296
        %v329 = vunpack.c.l.b16 %v297
        %v330 = vunpack.c.l.b16 %v298
        %v331 = vunpack.c.l.b16 %v299
        %v332 = vunpack.c.l.b16 %v300
        %v333 = vunpack.c.l.b16 %v301
        %v334 = vunpack.c.l.b16 %v302
        %v335 = vpack.c.b16 %v320, %v319
        %v336 = vpack.c.b16 %v322, %v321
        %v337 = vpack.c.b16 %v324, %v323
        %v338 = vpack.c.b16 %v326, %v325
        %v339 = vpack.c.b16 %v328, %v327
        %v340 = vpack.c.b16 %v330, %v329
        %v341 = vpack.c.b16 %v332, %v331
        %v342 = vpack.c.b16 %v334, %v333
        %351 = vst [vmem:[#allocation3] sm:$0xff] %v335
        %352 = vst [vmem:[#allocation3 + $0x8] sm:$0xff] %v336
        %353 = vst [vmem:[#allocation3 + $0x10] sm:$0xff] %v337
        %354 = vst [vmem:[#allocation3 + $0x18] sm:$0xff] %v338
        %355 = vst [vmem:[#allocation3 + $0x20] sm:$0xff] %v339
        %356 = vst [vmem:[#allocation3 + $0x28] sm:$0xff] %v340
        %357 = vst [vmem:[#allocation3 + $0x30] sm:$0xff] %v341
        %358 = vst [vmem:[#allocation3 + $0x38] sm:$0xff] %v342
      $region40: #{gcn_forward.1} parent=35 // pred_fallthru
        _
      // Predicated region
      $region41: #{gcn_forward.1} parent=35 // pred_check
        %p359 = pneg %p282
      $region42: #{gcn_forward.1} parent=35 // pred_check_branch
        %361 = sbr.rel (%p359) target = $region44
      $region43: #{gcn_forward.1} parent=35 // pred_region
        %362 = vst [vmem:[#allocation2] sm:$0xff] 0.0
        %363 = vst [vmem:[#allocation2 + $0x8] sm:$0xff] 0.0
        %364 = vst [vmem:[#allocation2 + $0x10] sm:$0xff] 0.0
        %365 = vst [vmem:[#allocation2 + $0x18] sm:$0xff] 0.0
        %366 = vst [vmem:[#allocation2 + $0x20] sm:$0xff] 0.0
        %367 = vst [vmem:[#allocation2 + $0x28] sm:$0xff] 0.0
        %368 = vst [vmem:[#allocation2 + $0x30] sm:$0xff] 0.0
        %369 = vst [vmem:[#allocation2 + $0x38] sm:$0xff] 0.0
        %370 = vst [vmem:[#allocation2 + $0x40] sm:$0xff] 0.0
        %371 = vst [vmem:[#allocation2 + $0x48] sm:$0xff] 0.0
        %372 = vst [vmem:[#allocation2 + $0x50] sm:$0xff] 0.0
        %373 = vst [vmem:[#allocation2 + $0x58] sm:$0xff] 0.0
        %374 = vst [vmem:[#allocation2 + $0x60] sm:$0xff] 0.0
        %375 = vst [vmem:[#allocation2 + $0x68] sm:$0xff] 0.0
        %376 = vst [vmem:[#allocation2 + $0x70] sm:$0xff] 0.0
        %377 = vst [vmem:[#allocation2 + $0x78] sm:$0xff] 0.0
      $region44: #{gcn_forward.1} parent=35 // pred_fallthru
        _
      %s378 = smul.u32 %s22, 128
      %s379 = sshra.s32 %s378, 4
      %s380 = sand.u32 %s378, 15
      %s381 = smul.addr %s379, 8
      %s382 = scalar_lea.vmem [#allocation3], %s381
      %v383 = vld [vmem:[%s382] sm:$0xff]
      %v384 = vld [vmem:[%s382 + $0x8] sm:$0xff]
      %v385 = vld [vmem:[%s382 + $0x10] sm:$0xff]
      %v386 = vld [vmem:[%s382 + $0x18] sm:$0xff]
      %v387 = vld [vmem:[%s382 + $0x20] sm:$0xff]
      %v388 = vld [vmem:[%s382 + $0x28] sm:$0xff]
      %v389 = vld [vmem:[%s382 + $0x30] sm:$0xff]
      %v390 = vld [vmem:[%s382 + $0x38] sm:$0xff]
      %s391 = sadd.s32 %s379, 8
      %s392 = smul.addr %s391, 8
      %s393 = scalar_lea.vmem [#allocation3], %s392
      %v394 = vld [vmem:[%s393] sm:$0xff]
      %v395 = vld [vmem:[%s393 + $0x8] sm:$0xff]
      %v396 = vld [vmem:[%s393 + $0x10] sm:$0xff]
      %v397 = vld [vmem:[%s393 + $0x18] sm:$0xff]
      %v398 = vld [vmem:[%s393 + $0x20] sm:$0xff]
      %v399 = vld [vmem:[%s393 + $0x28] sm:$0xff]
      %v400 = vld [vmem:[%s393 + $0x30] sm:$0xff]
      %v401 = vld [vmem:[%s393 + $0x38] sm:$0xff]
      %p402 = scmp.eq.s32.totalorder %s277, 0
      %s403 = scalar_select %p402, 1, 0
      %v404 = vstv %s403
      %vm405 = vcmp.eq.s32.totalorder %v404, 1
      %v406 = vsel %vm405, %v383, %v394
      %v407 = vsel %vm405, %v384, %v395
      %v408 = vsel %vm405, %v385, %v396
      %v409 = vsel %vm405, %v386, %v397
      %v410 = vsel %vm405, %v387, %v398
      %v411 = vsel %vm405, %v388, %v399
      %v412 = vsel %vm405, %v389, %v400
      %v413 = vsel %vm405, %v390, %v401
      %v414 = vld [vmem:[#allocation2] sm:$0xff]
      %v415 = vld [vmem:[#allocation2 + $0x8] sm:$0xff]
      %v416 = vld [vmem:[#allocation2 + $0x10] sm:$0xff]
      %v417 = vld [vmem:[#allocation2 + $0x18] sm:$0xff]
      %v418 = vld [vmem:[#allocation2 + $0x20] sm:$0xff]
      %v419 = vld [vmem:[#allocation2 + $0x28] sm:$0xff]
      %v420 = vld [vmem:[#allocation2 + $0x30] sm:$0xff]
      %v421 = vld [vmem:[#allocation2 + $0x38] sm:$0xff]
      %v422 = vld [vmem:[#allocation2 + $0x40] sm:$0xff]
      %v423 = vld [vmem:[#allocation2 + $0x48] sm:$0xff]
      %v424 = vld [vmem:[#allocation2 + $0x50] sm:$0xff]
      %v425 = vld [vmem:[#allocation2 + $0x58] sm:$0xff]
      %v426 = vld [vmem:[#allocation2 + $0x60] sm:$0xff]
      %v427 = vld [vmem:[#allocation2 + $0x68] sm:$0xff]
      %v428 = vld [vmem:[#allocation2 + $0x70] sm:$0xff]
      %v429 = vld [vmem:[#allocation2 + $0x78] sm:$0xff]
      %v430 = vld [vmem:[%s249] sm:$0xf]
      %v431 = vld [vmem:[%s249 + $0x4] sm:$0xf]
      %v432 = vld [vmem:[%s249 + $0x8] sm:$0xf]
      %v433 = vld [vmem:[%s249 + $0xc] sm:$0xf]
      %v434 = vld [vmem:[%s249 + $0x10] sm:$0xf]
      %v435 = vld [vmem:[%s249 + $0x14] sm:$0xf]
      %v436 = vld [vmem:[%s249 + $0x18] sm:$0xf]
      %v437 = vld [vmem:[%s249 + $0x1c] sm:$0xf]
      %v438 = vld [vmem:[%s249 + $0x20] sm:$0xf]
      %v439 = vld [vmem:[%s249 + $0x24] sm:$0xf]
      %v440 = vld [vmem:[%s249 + $0x28] sm:$0xf]
      %v441 = vld [vmem:[%s249 + $0x2c] sm:$0xf]
      %v442 = vld [vmem:[%s249 + $0x30] sm:$0xf]
      %v443 = vld [vmem:[%s249 + $0x34] sm:$0xf]
      %v444 = vld [vmem:[%s249 + $0x38] sm:$0xf]
      %v445 = vld [vmem:[%s249 + $0x3c] sm:$0xf]
      %v462 = vunpack.c.l.b16 %v430
      %v463 = vunpack.c.l.b16 %v431
      %v464 = vunpack.c.l.b16 %v432
      %v465 = vunpack.c.l.b16 %v433
      %v466 = vunpack.c.l.b16 %v434
      %v467 = vunpack.c.l.b16 %v435
      %v468 = vunpack.c.l.b16 %v436
      %v469 = vunpack.c.l.b16 %v437
      %v470 = vunpack.c.l.b16 %v438
      %v471 = vunpack.c.l.b16 %v439
      %v472 = vunpack.c.l.b16 %v440
      %v473 = vunpack.c.l.b16 %v441
      %v474 = vunpack.c.l.b16 %v442
      %v475 = vunpack.c.l.b16 %v443
      %v476 = vunpack.c.l.b16 %v444
      %v477 = vunpack.c.l.b16 %v445
      %v478 = vpack.c.b16 %v463, %v462
      %v479 = vpack.c.b16 %v465, %v464
      %v480 = vpack.c.b16 %v467, %v466
      %v481 = vpack.c.b16 %v469, %v468
      %v482 = vpack.c.b16 %v471, %v470
      %v483 = vpack.c.b16 %v473, %v472
      %v484 = vpack.c.b16 %v475, %v474
      %v485 = vpack.c.b16 %v477, %v476
      %494 = vmatprep.subr.bf16.mxu0 0
      %495 = vmatpush1.bf16.msra.mxu0 %v406
      %496 = vmatprep.subr.bf16.mxu0 0
      %497 = vmatpush1.bf16.msra.mxu0 %v407
      %498 = vmatprep.subr.bf16.mxu0 0
      %499 = vmatpush1.bf16.msra.mxu0 %v408
      %500 = vmatprep.subr.bf16.mxu0 0
      %501 = vmatpush1.bf16.msra.mxu0 %v409
      %502 = vmatprep.subr.bf16.mxu0 0
      %503 = vmatpush1.bf16.msra.mxu0 %v410
      %504 = vmatprep.subr.bf16.mxu0 0
      %505 = vmatpush1.bf16.msra.mxu0 %v411
      %506 = vmatprep.subr.bf16.mxu0 0
      %507 = vmatpush1.bf16.msra.mxu0 %v412
      %508 = vmatprep.subr.bf16.mxu0 0
      %509 = vmatpush1.bf16.msra.mxu0 %v413
      %510 = vmatprep.subr.bf16.mxu0 0
      %511 = vmatpush1.bf16.msra.mxu0 0
      %512 = vmatprep.subr.bf16.mxu0 0
      %513 = vmatpush1.bf16.msra.mxu0 0
      %514 = vmatprep.subr.bf16.mxu0 0
      %515 = vmatpush1.bf16.msra.mxu0 0
      %516 = vmatprep.subr.bf16.mxu0 0
      %517 = vmatpush1.bf16.msra.mxu0 0
      %518 = vmatprep.subr.bf16.mxu0 0
      %519 = vmatpush1.bf16.msra.mxu0 0
      %520 = vmatprep.subr.bf16.mxu0 0
      %521 = vmatpush1.bf16.msra.mxu0 0
      %522 = vmatprep.subr.bf16.mxu0 0
      %523 = vmatpush1.bf16.msra.mxu0 0
      %524 = vmatprep.subr.bf16.mxu0 0
      %525 = vmatpush1.bf16.msra.mxu0 0
      %526 = vmatprep.mubr.bf16.mxu0 0
      %527 = vmatmul.mubr.bf16.gmra.mrb[0].mxu0 %v478
      %v528 = vpop.f32.mrb[0].mxu0
      %v529 = vadd.f32 0.0, %v528
      %v530 = vpop.f32.mrb[0].mxu0
      %v531 = vpop.f32.mrb[0].mxu0
      %v532 = vadd.f32 0.0, %v531
      %v533 = vpop.f32.mrb[0].mxu0
      %534 = vmatprep.mubr.bf16.mxu0 0
      %535 = vmatmul.mubr.bf16.gmra.mrb[0].mxu0 %v479
      %v536 = vpop.f32.mrb[0].mxu0
      %v537 = vadd.f32 0.0, %v536
      %v538 = vpop.f32.mrb[0].mxu0
      %v539 = vpop.f32.mrb[0].mxu0
      %v540 = vadd.f32 0.0, %v539
      %v541 = vpop.f32.mrb[0].mxu0
      %542 = vmatprep.mubr.bf16.mxu0 0
      %543 = vmatmul.mubr.bf16.gmra.mrb[0].mxu0 %v480
      %v544 = vpop.f32.mrb[0].mxu0
      %v545 = vadd.f32 0.0, %v544
      %v546 = vpop.f32.mrb[0].mxu0
      %v547 = vpop.f32.mrb[0].mxu0
      %v548 = vadd.f32 0.0, %v547
      %v549 = vpop.f32.mrb[0].mxu0
      %550 = vmatprep.mubr.bf16.mxu0 0
      %551 = vmatmul.mubr.bf16.gmra.mrb[0].mxu0 %v481
      %v552 = vpop.f32.mrb[0].mxu0
      %v553 = vadd.f32 0.0, %v552
      %v554 = vpop.f32.mrb[0].mxu0
      %v555 = vpop.f32.mrb[0].mxu0
      %v556 = vadd.f32 0.0, %v555
      %v557 = vpop.f32.mrb[0].mxu0
      %558 = vmatprep.mubr.bf16.mxu0 0
      %559 = vmatmul.mubr.bf16.gmra.mrb[0].mxu0 %v482
      %v560 = vpop.f32.mrb[0].mxu0
      %v561 = vadd.f32 0.0, %v560
      %v562 = vpop.f32.mrb[0].mxu0
      %v563 = vpop.f32.mrb[0].mxu0
      %v564 = vadd.f32 0.0, %v563
      %v565 = vpop.f32.mrb[0].mxu0
      %566 = vmatprep.mubr.bf16.mxu0 0
      %567 = vmatmul.mubr.bf16.gmra.mrb[0].mxu0 %v483
      %v568 = vpop.f32.mrb[0].mxu0
      %v569 = vadd.f32 0.0, %v568
      %v570 = vpop.f32.mrb[0].mxu0
      %v571 = vpop.f32.mrb[0].mxu0
      %v572 = vadd.f32 0.0, %v571
      %v573 = vpop.f32.mrb[0].mxu0
      %574 = vmatprep.mubr.bf16.mxu0 0
      %575 = vmatmul.mubr.bf16.gmra.mrb[0].mxu0 %v484
      %v576 = vpop.f32.mrb[0].mxu0
      %v577 = vadd.f32 0.0, %v576
      %v578 = vpop.f32.mrb[0].mxu0
      %v579 = vpop.f32.mrb[0].mxu0
      %v580 = vadd.f32 0.0, %v579
      %v581 = vpop.f32.mrb[0].mxu0
      %582 = vmatprep.mubr.bf16.mxu0 0
      %583 = vmatmul.mubr.bf16.gmra.mrb[0].mxu0 %v485
      %v584 = vpop.f32.mrb[0].mxu0
      %v585 = vadd.f32 0.0, %v584
      %v586 = vpop.f32.mrb[0].mxu0
      %v587 = vpop.f32.mrb[0].mxu0
      %v588 = vadd.f32 0.0, %v587
      %v589 = vpop.f32.mrb[0].mxu0
      %590 = vdwg.mxu0
      %v591 = vadd.f32 %v414, %v529
      %v592 = vadd.f32 %v415, %v532
      %v593 = vadd.f32 %v416, %v537
      %v594 = vadd.f32 %v417, %v540
      %v595 = vadd.f32 %v418, %v545
      %v596 = vadd.f32 %v419, %v548
      %v597 = vadd.f32 %v420, %v553
      %v598 = vadd.f32 %v421, %v556
      %v599 = vadd.f32 %v422, %v561
      %v600 = vadd.f32 %v423, %v564
      %v601 = vadd.f32 %v424, %v569
      %v602 = vadd.f32 %v425, %v572
      %v603 = vadd.f32 %v426, %v577
      %v604 = vadd.f32 %v427, %v580
      %v605 = vadd.f32 %v428, %v585
      %v606 = vadd.f32 %v429, %v588
      %607 = vst [vmem:[#allocation2] sm:$0xff] %v591
      %608 = vst [vmem:[#allocation2 + $0x8] sm:$0xff] %v592
      %609 = vst [vmem:[#allocation2 + $0x10] sm:$0xff] %v593
      %610 = vst [vmem:[#allocation2 + $0x18] sm:$0xff] %v594
      %611 = vst [vmem:[#allocation2 + $0x20] sm:$0xff] %v595
      %612 = vst [vmem:[#allocation2 + $0x28] sm:$0xff] %v596
      %613 = vst [vmem:[#allocation2 + $0x30] sm:$0xff] %v597
      %614 = vst [vmem:[#allocation2 + $0x38] sm:$0xff] %v598
      %615 = vst [vmem:[#allocation2 + $0x40] sm:$0xff] %v599
      %616 = vst [vmem:[#allocation2 + $0x48] sm:$0xff] %v600
      %617 = vst [vmem:[#allocation2 + $0x50] sm:$0xff] %v601
      %618 = vst [vmem:[#allocation2 + $0x58] sm:$0xff] %v602
      %619 = vst [vmem:[#allocation2 + $0x60] sm:$0xff] %v603
      %620 = vst [vmem:[#allocation2 + $0x68] sm:$0xff] %v604
      %621 = vst [vmem:[#allocation2 + $0x70] sm:$0xff] %v605
      %622 = vst [vmem:[#allocation2 + $0x78] sm:$0xff] %v606
      // Predicated region
      $region45: #{gcn_forward.1} parent=35 // pred_check
        %p623 = pneg %p282
      $region46: #{gcn_forward.1} parent=35 // pred_check_branch
        %625 = sbr.rel (%p623) target = $region48
      $region47: #{gcn_forward.1} parent=35 // pred_region
        %v626 = vld [vmem:[#allocation2] sm:$0xff]
        %v627 = vld [vmem:[#allocation2 + $0x8] sm:$0xff]
        %v628 = vld [vmem:[#allocation2 + $0x10] sm:$0xff]
        %v629 = vld [vmem:[#allocation2 + $0x18] sm:$0xff]
        %v630 = vld [vmem:[#allocation2 + $0x20] sm:$0xff]
        %v631 = vld [vmem:[#allocation2 + $0x28] sm:$0xff]
        %v632 = vld [vmem:[#allocation2 + $0x30] sm:$0xff]
        %v633 = vld [vmem:[#allocation2 + $0x38] sm:$0xff]
        %v634 = vld [vmem:[#allocation2 + $0x40] sm:$0xff]
        %v635 = vld [vmem:[#allocation2 + $0x48] sm:$0xff]
        %v636 = vld [vmem:[#allocation2 + $0x50] sm:$0xff]
        %v637 = vld [vmem:[#allocation2 + $0x58] sm:$0xff]
        %v638 = vld [vmem:[#allocation2 + $0x60] sm:$0xff]
        %v639 = vld [vmem:[#allocation2 + $0x68] sm:$0xff]
        %v640 = vld [vmem:[#allocation2 + $0x70] sm:$0xff]
        %v641 = vld [vmem:[#allocation2 + $0x78] sm:$0xff]
        %v642 = vpack.c.bf16 %v627, %v626
        %v643 = vpack.c.bf16 %v629, %v628
        %v644 = vpack.c.bf16 %v631, %v630
        %v645 = vpack.c.bf16 %v633, %v632
        %v646 = vpack.c.bf16 %v635, %v634
        %v647 = vpack.c.bf16 %v637, %v636
        %v648 = vpack.c.bf16 %v639, %v638
        %v649 = vpack.c.bf16 %v641, %v640
        %v650 = vld [vmem:[%s255] sm:$0xf]
        %v651 = vld [vmem:[%s255 + $0x4] sm:$0xf]
        %v652 = vld [vmem:[%s255 + $0x8] sm:$0xf]
        %v653 = vld [vmem:[%s255 + $0xc] sm:$0xf]
        %v654 = vld [vmem:[%s255 + $0x10] sm:$0xf]
        %v655 = vld [vmem:[%s255 + $0x14] sm:$0xf]
        %v656 = vld [vmem:[%s255 + $0x18] sm:$0xf]
        %v657 = vld [vmem:[%s255 + $0x1c] sm:$0xf]
        %v658 = vld [vmem:[%s255 + $0x20] sm:$0xf]
        %v659 = vld [vmem:[%s255 + $0x24] sm:$0xf]
        %v660 = vld [vmem:[%s255 + $0x28] sm:$0xf]
        %v661 = vld [vmem:[%s255 + $0x2c] sm:$0xf]
        %v662 = vld [vmem:[%s255 + $0x30] sm:$0xf]
        %v663 = vld [vmem:[%s255 + $0x34] sm:$0xf]
        %v664 = vld [vmem:[%s255 + $0x38] sm:$0xf]
        %v665 = vld [vmem:[%s255 + $0x3c] sm:$0xf]
        %v666 = vld [vmem:[%s258] sm:$0x1]
        %v668 = vlaneseq
        %v669 = vshrl.u32 %v668, 7
        %v670 = vsub.s32 0, %v669
        %v671 = vrot.slane %v666, %v670
        %v689 = vunpack.c.l.b16 %v650
        %v690 = vunpack.c.l.b16 %v651
        %v691 = vunpack.c.l.b16 %v652
        %v692 = vunpack.c.l.b16 %v653
        %v693 = vunpack.c.l.b16 %v654
        %v694 = vunpack.c.l.b16 %v655
        %v695 = vunpack.c.l.b16 %v656
        %v696 = vunpack.c.l.b16 %v657
        %v697 = vunpack.c.l.b16 %v658
        %v698 = vunpack.c.l.b16 %v659
        %v699 = vunpack.c.l.b16 %v660
        %v700 = vunpack.c.l.b16 %v661
        %v701 = vunpack.c.l.b16 %v662
        %v702 = vunpack.c.l.b16 %v663
        %v703 = vunpack.c.l.b16 %v664
        %v704 = vunpack.c.l.b16 %v665
        %v705 = vpack.c.b16 %v690, %v689
        %v706 = vpack.c.b16 %v692, %v691
        %v707 = vpack.c.b16 %v694, %v693
        %v708 = vpack.c.b16 %v696, %v695
        %v709 = vpack.c.b16 %v698, %v697
        %v710 = vpack.c.b16 %v700, %v699
        %v711 = vpack.c.b16 %v702, %v701
        %v712 = vpack.c.b16 %v704, %v703
        %721 = vmatprep.subr.bf16.mxu0 0
        %722 = vmatpush1.bf16.msra.mxu0 %v705
        %723 = vmatprep.subr.bf16.mxu0 0
        %724 = vmatpush1.bf16.msra.mxu0 %v706
        %725 = vmatprep.subr.bf16.mxu0 0
        %726 = vmatpush1.bf16.msra.mxu0 %v707
        %727 = vmatprep.subr.bf16.mxu0 0
        %728 = vmatpush1.bf16.msra.mxu0 %v708
        %729 = vmatprep.subr.bf16.mxu0 0
        %730 = vmatpush1.bf16.msra.mxu0 %v709
        %731 = vmatprep.subr.bf16.mxu0 0
        %732 = vmatpush1.bf16.msra.mxu0 %v710
        %733 = vmatprep.subr.bf16.mxu0 0
        %734 = vmatpush1.bf16.msra.mxu0 %v711
        %735 = vmatprep.subr.bf16.mxu0 0
        %736 = vmatpush1.bf16.msra.mxu0 %v712
        %737 = vmatprep.subr.bf16.mxu0 0
        %738 = vmatpush1.bf16.msra.mxu0 0
        %739 = vmatprep.subr.bf16.mxu0 0
        %740 = vmatpush1.bf16.msra.mxu0 0
        %741 = vmatprep.subr.bf16.mxu0 0
        %742 = vmatpush1.bf16.msra.mxu0 0
        %743 = vmatprep.subr.bf16.mxu0 0
        %744 = vmatpush1.bf16.msra.mxu0 0
        %745 = vmatprep.subr.bf16.mxu0 0
        %746 = vmatpush1.bf16.msra.mxu0 0
        %747 = vmatprep.subr.bf16.mxu0 0
        %748 = vmatpush1.bf16.msra.mxu0 0
        %749 = vmatprep.subr.bf16.mxu0 0
        %750 = vmatpush1.bf16.msra.mxu0 0
        %751 = vmatprep.subr.bf16.mxu0 0
        %752 = vmatpush1.bf16.msra.mxu0 0
        %753 = vmatprep.mubr.bf16.mxu0 0
        %754 = vmatmul.mubr.bf16.gmra.mrb[0].mxu0 %v642
        %v755 = vpop.f32.mrb[0].mxu0
        %v756 = vadd.f32 %v671, %v755
        %v757 = vpop.f32.mrb[0].mxu0
        %v758 = vpop.f32.mrb[0].mxu0
        %v759 = vadd.f32 %v671, %v758
        %v760 = vpop.f32.mrb[0].mxu0
        %761 = vmatprep.mubr.bf16.mxu0 0
        %762 = vmatmul.mubr.bf16.gmra.mrb[0].mxu0 %v643
        %v763 = vpop.f32.mrb[0].mxu0
        %v764 = vadd.f32 %v671, %v763
        %v765 = vpop.f32.mrb[0].mxu0
        %v766 = vpop.f32.mrb[0].mxu0
        %v767 = vadd.f32 %v671, %v766
        %v768 = vpop.f32.mrb[0].mxu0
        %769 = vmatprep.mubr.bf16.mxu0 0
        %770 = vmatmul.mubr.bf16.gmra.mrb[0].mxu0 %v644
        %v771 = vpop.f32.mrb[0].mxu0
        %v772 = vadd.f32 %v671, %v771
        %v773 = vpop.f32.mrb[0].mxu0
        %v774 = vpop.f32.mrb[0].mxu0
        %v775 = vadd.f32 %v671, %v774
        %v776 = vpop.f32.mrb[0].mxu0
        %777 = vmatprep.mubr.bf16.mxu0 0
        %778 = vmatmul.mubr.bf16.gmra.mrb[0].mxu0 %v645
        %v779 = vpop.f32.mrb[0].mxu0
        %v780 = vadd.f32 %v671, %v779
        %v781 = vpop.f32.mrb[0].mxu0
        %v782 = vpop.f32.mrb[0].mxu0
        %v783 = vadd.f32 %v671, %v782
        %v784 = vpop.f32.mrb[0].mxu0
        %785 = vmatprep.mubr.bf16.mxu0 0
        %786 = vmatmul.mubr.bf16.gmra.mrb[0].mxu0 %v646
        %v787 = vpop.f32.mrb[0].mxu0
        %v788 = vadd.f32 %v671, %v787
        %v789 = vpop.f32.mrb[0].mxu0
        %v790 = vpop.f32.mrb[0].mxu0
        %v791 = vadd.f32 %v671, %v790
        %v792 = vpop.f32.mrb[0].mxu0
        %793 = vmatprep.mubr.bf16.mxu0 0
        %794 = vmatmul.mubr.bf16.gmra.mrb[0].mxu0 %v647
        %v795 = vpop.f32.mrb[0].mxu0
        %v796 = vadd.f32 %v671, %v795
        %v797 = vpop.f32.mrb[0].mxu0
        %v798 = vpop.f32.mrb[0].mxu0
        %v799 = vadd.f32 %v671, %v798
        %v800 = vpop.f32.mrb[0].mxu0
        %801 = vmatprep.mubr.bf16.mxu0 0
        %802 = vmatmul.mubr.bf16.gmra.mrb[0].mxu0 %v648
        %v803 = vpop.f32.mrb[0].mxu0
        %v804 = vadd.f32 %v671, %v803
        %v805 = vpop.f32.mrb[0].mxu0
        %v806 = vpop.f32.mrb[0].mxu0
        %v807 = vadd.f32 %v671, %v806
        %v808 = vpop.f32.mrb[0].mxu0
        %809 = vmatprep.mubr.bf16.mxu0 0
        %810 = vmatmul.mubr.bf16.gmra.mrb[0].mxu0 %v649
        %v811 = vpop.f32.mrb[0].mxu0
        %v812 = vadd.f32 %v671, %v811
        %v813 = vpop.f32.mrb[0].mxu0
        %v814 = vpop.f32.mrb[0].mxu0
        %v815 = vadd.f32 %v671, %v814
        %v816 = vpop.f32.mrb[0].mxu0
        %817 = vdwg.mxu0
        %818 = vst [vmem:[%s263] sm:$0xff] %v756
        %819 = vst [vmem:[%s263 + $0x8] sm:$0xff] %v759
        %820 = vst [vmem:[%s263 + $0x10] sm:$0xff] %v764
        %821 = vst [vmem:[%s263 + $0x18] sm:$0xff] %v767
        %822 = vst [vmem:[%s263 + $0x20] sm:$0xff] %v772
        %823 = vst [vmem:[%s263 + $0x28] sm:$0xff] %v775
        %824 = vst [vmem:[%s263 + $0x30] sm:$0xff] %v780
        %825 = vst [vmem:[%s263 + $0x38] sm:$0xff] %v783
        %826 = vst [vmem:[%s263 + $0x40] sm:$0xff] %v788
        %827 = vst [vmem:[%s263 + $0x48] sm:$0xff] %v791
        %828 = vst [vmem:[%s263 + $0x50] sm:$0xff] %v796
        %829 = vst [vmem:[%s263 + $0x58] sm:$0xff] %v799
        %830 = vst [vmem:[%s263 + $0x60] sm:$0xff] %v804
        %831 = vst [vmem:[%s263 + $0x68] sm:$0xff] %v807
        %832 = vst [vmem:[%s263 + $0x70] sm:$0xff] %v812
        %833 = vst [vmem:[%s263 + $0x78] sm:$0xff] %v815
        %v834 = vpack.c.bf16 %v759, %v756
        %v835 = vpack.c.bf16 %v767, %v764
        %v836 = vpack.c.bf16 %v775, %v772
        %v837 = vpack.c.bf16 %v783, %v780
        %v838 = vpack.c.bf16 %v791, %v788
        %v839 = vpack.c.bf16 %v799, %v796
        %v840 = vpack.c.bf16 %v807, %v804
        %v841 = vpack.c.bf16 %v815, %v812
        %s842 = smul.u32 %s21, 128
        // Predicated region
        $region49: #{gcn_forward.1} parent=47 // pred_check
          %p843 = pneg %p402
        $region50: #{gcn_forward.1} parent=47 // pred_check_branch
          %845 = sbr.rel (%p843) target = $region52
        $region51: #{gcn_forward.1} parent=47 // pred_region
          %s846 = sshra.s32 %s842, 4
          %s847 = sand.u32 %s842, 15
          %s848 = sadd.s32 %s846, 8
          %s849 = smul.addr %s848, 8
          %s850 = scalar_lea.vmem [#allocation3], %s849
          %851 = vst [vmem:[%s850] sm:$0xff] %v834
          %852 = vst [vmem:[%s850 + $0x8] sm:$0xff] %v835
          %853 = vst [vmem:[%s850 + $0x10] sm:$0xff] %v836
          %854 = vst [vmem:[%s850 + $0x18] sm:$0xff] %v837
          %855 = vst [vmem:[%s850 + $0x20] sm:$0xff] %v838
          %856 = vst [vmem:[%s850 + $0x28] sm:$0xff] %v839
          %857 = vst [vmem:[%s850 + $0x30] sm:$0xff] %v840
          %858 = vst [vmem:[%s850 + $0x38] sm:$0xff] %v841
        $region52: #{gcn_forward.1} parent=47 // pred_fallthru
          _
        %p859 = scmp.eq.s32.totalorder %s277, 1
        // Predicated region
        $region53: #{gcn_forward.1} parent=47 // pred_check
          %p860 = pneg %p859
        $region54: #{gcn_forward.1} parent=47 // pred_check_branch
          %862 = sbr.rel (%p860) target = $region56
        $region55: #{gcn_forward.1} parent=47 // pred_region
          %s863 = sshra.s32 %s842, 4
          %s864 = sand.u32 %s842, 15
          %s865 = smul.addr %s863, 8
          %s866 = scalar_lea.vmem [#allocation3], %s865
          %867 = vst [vmem:[%s866] sm:$0xff] %v834
          %868 = vst [vmem:[%s866 + $0x8] sm:$0xff] %v835
          %869 = vst [vmem:[%s866 + $0x10] sm:$0xff] %v836
          %870 = vst [vmem:[%s866 + $0x18] sm:$0xff] %v837
          %871 = vst [vmem:[%s866 + $0x20] sm:$0xff] %v838
          %872 = vst [vmem:[%s866 + $0x28] sm:$0xff] %v839
          %873 = vst [vmem:[%s866 + $0x30] sm:$0xff] %v840
          %874 = vst [vmem:[%s866 + $0x38] sm:$0xff] %v841
        $region56: #{gcn_forward.1} parent=47 // pred_fallthru
          _
      $region48: #{gcn_forward.1} parent=35 // pred_fallthru
        _
      %s875 = smul.u32 16, %s21
      %p876 = scmp.lt.s32.totalorder %s875, 15
      %s877 = scalar_select %p876, %s875, 15
      %s878 = smul.addr %s877, 8
      %s879 = scalar_lea.vmem %s4, %s878
      // Predicated region
      $region57: #{gcn_forward.1} parent=35 // pred_check
        %p880 = pneg %p153
      $region58: #{gcn_forward.1} parent=35 // pred_check_branch
        %882 = sbr.rel (%p880) target = $region60
      $region59: #{gcn_forward.1} parent=35 // pred_region
        %s883 = smul.u32 16, %s21
      $region60: #{gcn_forward.1} parent=35 // pred_fallthru
        _
      // Predicated region
      $region61: #{gcn_forward.1} parent=35 // pred_check
        %p884 = pneg %p153
      $region62: #{gcn_forward.1} parent=35 // pred_check_branch
        %886 = sbr.rel (%p884) target = $region64
      $region63: #{gcn_forward.1} parent=35 // pred_region
        %s887 = smul.u32 16, %s21
        %p888 = scmp.lt.s32.totalorder %s887, 15
        %s889 = scalar_select %p888, %s887, 15
        %s890 = smul.addr %s889, 8
        %s891 = scalar_lea.vmem %s4, %s890
      $region64: #{gcn_forward.1} parent=35 // pred_fallthru
        _
    $region36: #{gcn_forward.1} parent=5 // pred_fallthru
      _
    %p892 = scmp.le.s32.totalorder 2, %s10
    // Predicated region
    $region65: #{gcn_forward.1} parent=5 // pred_check
      %p893 = pneg %p892
    $region66: #{gcn_forward.1} parent=5 // pred_check_branch
      %895 = sbr.rel (%p893) target = $region68
    $region67: #{gcn_forward.1} parent=5 // pred_region
      %s896 = ssub.s32 %s10, 2
    $region68: #{gcn_forward.1} parent=5 // pred_fallthru
      _
  $region6: #{gcn_forward.1} parent=0 // loop_footer
    %s14 = sadd.s32 1, %s10
  $region7: #{gcn_forward.1} parent=0 // loop_footer_branch
    %9 = sbr.rel target = $region3
  $region8: #{gcn_forward.1} parent=0 // loop_exit
    _

</llo_original>
